<compile_context>
chip_gen: v5e
topology: v5e:2x2
jax: 0.10.0
libtpu: 0.0.40
codegen_flags: <defaults>
</compile_context>

<pallas_src>
import jax
import jax.numpy as jnp
from jax.experimental import pallas as pl
from jax.experimental.pallas import tpu as pltpu

PAD = 128  # lane-dense width for hidden/output feature dims


def _round_up(n, m):
    return ((n + m - 1) // m) * m


def mlp_kernel(x_ref, w1_ref, w234_ref, b_ref, o_ref):
    """Fused 4-layer MLP on one (bt, in_dim) activation tile.

    x_ref:    (bt, in_dim)    input dtype (cast to bf16 in-kernel)
    w1_ref:   (in_dim, 128)   bf16, resident
    w234_ref: (3, 128, 128)   bf16, resident (zero-padded to 128x128)
    b_ref:    (4, 128)        f32 biases (zero-padded), resident
    o_ref:    (bt, 128)       bf16 lane-dense output (valid cols = out_dim)
    """
    b = b_ref[...]                                   # (4, 128) f32, tiny
    x = x_ref[...].astype(jnp.bfloat16)              # natural-width load, VPU cast
    h = jnp.dot(x, w1_ref[...], preferred_element_type=jnp.float32)
    h = jnp.maximum(h + b[0:1, :], 0.0)
    for l in range(3):                               # static unroll, layers 2..4
        h = jnp.dot(h.astype(jnp.bfloat16), w234_ref[l],
                    preferred_element_type=jnp.float32)
        h = jnp.maximum(h + b[l + 1:l + 2, :], 0.0)  # ReLU also after final layer (spec)
    o_ref[...] = h.astype(o_ref.dtype)


def pack_params(params, pad=PAD):
    """params: 4 x (w:(in,out) f32, b:(out,) f32) -> (w1 (in,128) bf16,
    w234 (3,128,128) bf16, biases (4,128) f32). Padding is zeros, so padded
    lanes stay exactly zero through every ReLU layer."""
    (w1, _), *rest = params
    in_dim = w1.shape[0]
    w1p = jnp.zeros((in_dim, pad), jnp.float32)
    w1p = w1p.at[:, :w1.shape[1]].set(w1).astype(jnp.bfloat16)
    w234 = []
    for w, _ in rest:
        wp = jnp.zeros((pad, pad), jnp.float32)
        wp = wp.at[:w.shape[0], :w.shape[1]].set(w)
        w234.append(wp.astype(jnp.bfloat16))
    w234 = jnp.stack(w234)                                    # (3, pad, pad) bf16
    biases = jnp.stack([jnp.zeros((pad,), jnp.float32).at[:b.shape[0]].set(b)
                        for _, b in params])                  # (4, pad) f32
    return w1p, w234, biases


def regression_model_forward(x, packed, out_dim, *, batch_tile=2048):
    """x: (batch, in_dim) float. packed = pack_params(params). Returns (batch, out_dim) f32."""
    w1p, w234, biases = packed
    batch, in_dim = x.shape
    assert w1p.shape[0] == in_dim

    # --- tile sizing -------------------------------------------------------
    if batch <= batch_tile and batch < 1024:
        bt = batch                                   # single tile: block == full array
    else:
        n_tiles = max(2, pl.cdiv(batch, batch_tile))  # >=2 tiles -> both TCs on v7x
        bt = _round_up(pl.cdiv(batch, n_tiles), 16)   # 16-row multiples (bf16 packing)
    pb = _round_up(batch, bt)
    grid = (pb // bt,)

    x_in = x if pb == batch else jnp.pad(x, ((0, pb - batch), (0, 0)))

    # --- scoped-VMEM limit only if a big tile would exceed v5e's 16 MiB default ---
    x_item = jnp.dtype(x.dtype).itemsize
    est = (2 * bt * in_dim * x_item                  # input, double-buffered
           + 2 * bt * PAD * 2                        # bf16 output, double-buffered
           + 2 * (in_dim * PAD + 3 * PAD * PAD) * 2  # resident bf16 weights
           + 2 * 4 * PAD * 4                         # resident f32 biases
           + 6 * bt * PAD * 4)                       # f32 intermediates / spill headroom
    vmem_limit = None if est <= 14 * 2**20 else min(_round_up(est, 2**20), 64 * 2**20)

    out = pl.pallas_call(
        mlp_kernel,
        out_shape=jax.ShapeDtypeStruct((pb, PAD), jnp.bfloat16),
        grid_spec=pltpu.PrefetchScalarGridSpec(
            num_scalar_prefetch=0,
            grid=grid,
            in_specs=[
                pl.BlockSpec((bt, in_dim), lambda i: (i, 0)),       # natural-width input tiles
                pl.BlockSpec((in_dim, PAD), lambda i: (0, 0)),      # W1, resident
                pl.BlockSpec((3, PAD, PAD), lambda i: (0, 0, 0)),   # W2..W4 stacked, resident
                pl.BlockSpec((4, PAD), lambda i: (0, 0)),           # biases, resident
            ],
            out_specs=pl.BlockSpec((bt, PAD), lambda i: (i, 0)),    # lane-dense bf16 output
        ),
        compiler_params=pltpu.CompilerParams(
            dimension_semantics=("parallel",),       # megacore sharding on v7x
            vmem_limit_bytes=vmem_limit),
    )(x_in, w1p, w234, biases)
    return out[:batch, :out_dim].astype(jnp.float32)


def init_linear(key, in_dim, out_dim):
    # PyTorch nn.Linear default init: uniform +- 1/sqrt(fan_in) for weight and bias.
    kw, kb = jax.random.split(key)
    bound = 1.0 / jnp.sqrt(jnp.float32(in_dim))
    w = jax.random.uniform(kw, (in_dim, out_dim), jnp.float32, -bound, bound)
    b = jax.random.uniform(kb, (out_dim,), jnp.float32, -bound, bound)
    return w, b


def reference_forward_f32(x, params):
    h = x
    for w, b in params:
        h = jnp.maximum(h @ w + b, 0.0)              # ReLU after every layer, incl. last
    return h


def reference_forward_matched(x, params):
    """Same numerics as the kernel: bf16 operands, f32 accumulation, f32 bias add,
    bf16 output store."""
    n = len(params)
    h = x.astype(jnp.bfloat16)
    for l, (w, b) in enumerate(params):
        acc = jnp.dot(h, w.astype(jnp.bfloat16), preferred_element_type=jnp.float32)
        h = jnp.maximum(acc + b, 0.0)
        h = h.astype(jnp.bfloat16)
        if l == n - 1:
            h = h.astype(jnp.float32)
    return h


if __name__ == "__main__":
    # RegressionModel(32, 64, 64, 32, 16), batch=8
    input_dim, hidden_dim1, hidden_dim2, hidden_dim3, output_dim = 32, 64, 64, 32, 16
    batch = 8

    key = jax.random.PRNGKey(0)
    kx, k1, k2, k3, k4 = jax.random.split(key, 5)

    x = jax.random.normal(kx, (batch, input_dim), jnp.float32)
    params = (
        init_linear(k1, input_dim, hidden_dim1),
        init_linear(k2, hidden_dim1, hidden_dim2),
        init_linear(k3, hidden_dim2, hidden_dim3),
        init_linear(k4, hidden_dim3, output_dim),
    )
    packed = pack_params(params)

    out = regression_model_forward(x, packed, output_dim)
    out = jax.block_until_ready(out)
    assert out.shape == (batch, output_dim)

    # Exact-numerics reference (bf16 operands, f32 accumulation) -> tight tolerance.
    ref_m = reference_forward_matched(x, params)
    assert jnp.allclose(out, ref_m, atol=2e-3, rtol=2e-3), "mismatch vs matched-numerics ref"

    # Full-precision reference -> loose tolerance (bf16 quantization of weights/activations).
    ref_f32 = reference_forward_f32(x, params)
    assert jnp.allclose(out, ref_f32, atol=5e-2, rtol=5e-2), "mismatch vs f32 ref"

    print("KERNEL_OK")
</pallas_src>

<mosaic_0001>
module attributes {stable_mosaic.version = 11 : i64} {
  func.func @mlp_kernel(%arg0: i32, %arg1: memref<8x32xf32, #tpu.memory_space<vmem>>, %arg2: memref<32x128xbf16, #tpu.memory_space<vmem>>, %arg3: memref<3x128x128xbf16, #tpu.memory_space<vmem>>, %arg4: memref<4x128xf32, #tpu.memory_space<vmem>>, %arg5: memref<8x128xbf16, #tpu.memory_space<vmem>>) attributes {dimension_semantics = [#tpu.dimension_semantics<parallel>], iteration_bounds = array<i64: 1>, scalar_prefetch = 0 : i64, scratch_operands = 0 : i64, tpu.core_type = #tpu.core_type<tc>, window_params = [{transform_indices = @transform_0, window_bounds = array<i64: 8, 32>}, {pipeline_mode = #tpu.pipeline_mode<synchronous>, transform_indices = @transform_1, window_bounds = array<i64: 32, 128>}, {pipeline_mode = #tpu.pipeline_mode<synchronous>, transform_indices = @transform_2, window_bounds = array<i64: 3, 128, 128>}, {pipeline_mode = #tpu.pipeline_mode<synchronous>, transform_indices = @transform_3, window_bounds = array<i64: 4, 128>}, {transform_indices = @transform_4, window_bounds = array<i64: 8, 128>}]} {
    %c0 = arith.constant 0 : index
    %c0_0 = arith.constant 0 : index
    %0 = vector.load %arg4[%c0, %c0_0] : memref<4x128xf32, #tpu.memory_space<vmem>>, vector<4x128xf32>
    %c0_1 = arith.constant 0 : index
    %c0_2 = arith.constant 0 : index
    %1 = vector.load %arg1[%c0_1, %c0_2] : memref<8x32xf32, #tpu.memory_space<vmem>>, vector<8x32xf32>
    %2 = arith.truncf %1 : vector<8x32xf32> to vector<8x32xbf16>
    %c0_3 = arith.constant 0 : index
    %c0_4 = arith.constant 0 : index
    %3 = vector.load %arg2[%c0_3, %c0_4] : memref<32x128xbf16, #tpu.memory_space<vmem>>, vector<32x128xbf16>
    %cst = arith.constant dense<0.000000e+00> : vector<8x128xf32>
    %4 = tpu.matmul %2, %3, %cst {dimension_numbers = #tpu.dot_dimension_numbers<[1], [0], [0], [1], [0, 0, 1, 1], [], []>} : vector<8x32xbf16>, vector<32x128xbf16>, vector<8x128xf32> -> vector<8x128xf32>
    %5 = vector.extract_strided_slice %0 {offsets = [0, 0], sizes = [1, 128], strides = [1, 1]} : vector<4x128xf32> to vector<1x128xf32>
    %6 = vector.broadcast %5 : vector<1x128xf32> to vector<8x128xf32>
    %7 = arith.addf %4, %6 : vector<8x128xf32>
    %cst_5 = arith.constant 0.000000e+00 : f32
    %8 = vector.broadcast %cst_5 : f32 to vector<8x128xf32>
    %9 = arith.maximumf %7, %8 : vector<8x128xf32>
    %10 = arith.truncf %9 : vector<8x128xf32> to vector<8x128xbf16>
    %c0_6 = arith.constant 0 : index
    %c0_7 = arith.constant 0 : index
    %c0_8 = arith.constant 0 : index
    %11 = vector.load %arg3[%c0_6, %c0_7, %c0_8] : memref<3x128x128xbf16, #tpu.memory_space<vmem>>, vector<1x128x128xbf16>
    %12 = vector.shape_cast %11 : vector<1x128x128xbf16> to vector<128x128xbf16>
    %cst_9 = arith.constant dense<0.000000e+00> : vector<8x128xf32>
    %13 = tpu.matmul %10, %12, %cst_9 {dimension_numbers = #tpu.dot_dimension_numbers<[1], [0], [0], [1], [0, 0, 1, 1], [], []>} : vector<8x128xbf16>, vector<128x128xbf16>, vector<8x128xf32> -> vector<8x128xf32>
    %14 = vector.extract_strided_slice %0 {offsets = [1, 0], sizes = [1, 128], strides = [1, 1]} : vector<4x128xf32> to vector<1x128xf32>
    %15 = vector.broadcast %14 : vector<1x128xf32> to vector<8x128xf32>
    %16 = arith.addf %13, %15 : vector<8x128xf32>
    %cst_10 = arith.constant 0.000000e+00 : f32
    %17 = vector.broadcast %cst_10 : f32 to vector<8x128xf32>
    %18 = arith.maximumf %16, %17 : vector<8x128xf32>
    %19 = arith.truncf %18 : vector<8x128xf32> to vector<8x128xbf16>
    %c1 = arith.constant 1 : index
    %c0_11 = arith.constant 0 : index
    %c0_12 = arith.constant 0 : index
    %20 = vector.load %arg3[%c1, %c0_11, %c0_12] : memref<3x128x128xbf16, #tpu.memory_space<vmem>>, vector<1x128x128xbf16>
    %21 = vector.shape_cast %20 : vector<1x128x128xbf16> to vector<128x128xbf16>
    %cst_13 = arith.constant dense<0.000000e+00> : vector<8x128xf32>
    %22 = tpu.matmul %19, %21, %cst_13 {dimension_numbers = #tpu.dot_dimension_numbers<[1], [0], [0], [1], [0, 0, 1, 1], [], []>} : vector<8x128xbf16>, vector<128x128xbf16>, vector<8x128xf32> -> vector<8x128xf32>
    %23 = vector.extract_strided_slice %0 {offsets = [2, 0], sizes = [1, 128], strides = [1, 1]} : vector<4x128xf32> to vector<1x128xf32>
    %24 = vector.broadcast %23 : vector<1x128xf32> to vector<8x128xf32>
    %25 = arith.addf %22, %24 : vector<8x128xf32>
    %cst_14 = arith.constant 0.000000e+00 : f32
    %26 = vector.broadcast %cst_14 : f32 to vector<8x128xf32>
    %27 = arith.maximumf %25, %26 : vector<8x128xf32>
    %28 = arith.truncf %27 : vector<8x128xf32> to vector<8x128xbf16>
    %c2 = arith.constant 2 : index
    %c0_15 = arith.constant 0 : index
    %c0_16 = arith.constant 0 : index
    %29 = vector.load %arg3[%c2, %c0_15, %c0_16] : memref<3x128x128xbf16, #tpu.memory_space<vmem>>, vector<1x128x128xbf16>
    %30 = vector.shape_cast %29 : vector<1x128x128xbf16> to vector<128x128xbf16>
    %cst_17 = arith.constant dense<0.000000e+00> : vector<8x128xf32>
    %31 = tpu.matmul %28, %30, %cst_17 {dimension_numbers = #tpu.dot_dimension_numbers<[1], [0], [0], [1], [0, 0, 1, 1], [], []>} : vector<8x128xbf16>, vector<128x128xbf16>, vector<8x128xf32> -> vector<8x128xf32>
    %32 = vector.extract_strided_slice %0 {offsets = [3, 0], sizes = [1, 128], strides = [1, 1]} : vector<4x128xf32> to vector<1x128xf32>
    %33 = vector.broadcast %32 : vector<1x128xf32> to vector<8x128xf32>
    %34 = arith.addf %31, %33 : vector<8x128xf32>
    %cst_18 = arith.constant 0.000000e+00 : f32
    %35 = vector.broadcast %cst_18 : f32 to vector<8x128xf32>
    %36 = arith.maximumf %34, %35 : vector<8x128xf32>
    %37 = arith.truncf %36 : vector<8x128xf32> to vector<8x128xbf16>
    %c0_19 = arith.constant 0 : index
    %c0_20 = arith.constant 0 : index
    %38 = vector.load %arg5[%c0_19, %c0_20] : memref<8x128xbf16, #tpu.memory_space<vmem>>, vector<8x128xbf16>
    tpu.vector_store %arg5[%c0_19, %c0_20], %37 {strides = array<i32>} : memref<8x128xbf16, #tpu.memory_space<vmem>>, vector<8x128xbf16>,
    return
  }
  func.func @transform_0(%arg0: i32) -> (i32, i32) {
    %c0_i32 = arith.constant 0 : i32
    %c0_i32_0 = arith.constant 0 : i32
    return %arg0, %c0_i32 : i32, i32
  }
  func.func @transform_1(%arg0: i32) -> (i32, i32) {
    %c0_i32 = arith.constant 0 : i32
    %c0_i32_0 = arith.constant 0 : i32
    %c0_i32_1 = arith.constant 0 : i32
    return %c0_i32, %c0_i32_0 : i32, i32
  }
  func.func @transform_2(%arg0: i32) -> (i32, i32, i32) {
    %c0_i32 = arith.constant 0 : i32
    %c0_i32_0 = arith.constant 0 : i32
    %c0_i32_1 = arith.constant 0 : i32
    %c0_i32_2 = arith.constant 0 : i32
    return %c0_i32, %c0_i32_0, %c0_i32_1 : i32, i32, i32
  }
  func.func @transform_3(%arg0: i32) -> (i32, i32) {
    %c0_i32 = arith.constant 0 : i32
    %c0_i32_0 = arith.constant 0 : i32
    %c0_i32_1 = arith.constant 0 : i32
    return %c0_i32, %c0_i32_0 : i32, i32
  }
  func.func @transform_4(%arg0: i32) -> (i32, i32) {
    %c0_i32 = arith.constant 0 : i32
    %c0_i32_0 = arith.constant 0 : i32
    return %arg0, %c0_i32 : i32, i32
  }
}

</mosaic_0001>

<llo_original>
// kernel: tpu_custom_call.1
$region0: #{tpu_custom_call.1}
  #allocation0 [shape = 'u32[]', space=smem, size = 0x4, offset = 0x4, fixed_abs, tag = 'smem constant byte address 0x4 - core index']
  #allocation1 [shape = 'u32[72,128]{1,0:T(1,128)}', space=vmem, size = 0x9000, scoped, tag = 'internal scratch']
  %s0 = inlined_call_operand.hbm [shape: f32[8,32], index: 0, kind: input, shape index: {}]
  %s1 = inlined_call_operand.hbm [shape: bf16[32,128], index: 1, kind: input, shape index: {}]
  %s2 = inlined_call_operand.hbm [shape: bf16[3,128,128], index: 2, kind: input, shape index: {}]
  %s3 = inlined_call_operand.hbm [shape: f32[4,128], index: 3, kind: input, shape index: {}]
  %s4 = inlined_call_operand.hbm [shape: bf16[8,128], index: 4, kind: output, shape index: {}]
  %s5 = sld [smem:[#allocation0]]
  $region42: #{tpu_custom_call.1} parent=0
    _
  %s7 = ssub.s32 1, %s5
  %s8 = scalar_select 0, %s7, %s5
  $region1: #{tpu_custom_call.1} parent=0
    #allocation2 [shape = 'u8[4096]{0}', space=vmem, size = 0x1000, scoped, tag = 'input window, operand 0, single buffered']
    #allocation3 [shape = 's32[1]{0}', space=sflag, size = 0x4, scoped, tag = 'scoped memory for tpu_custom_call.1']
    #allocation4 [shape = 's32[1]{0}', space=sflag, size = 0x4, scoped, tag = 'scoped memory for tpu_custom_call.1']
    #allocation5 [shape = 'u8[8192]{0}', space=vmem, size = 0x2000, scoped, tag = 'input window, operand 1, single buffered']
    #allocation6 [shape = 's32[1]{0}', space=sflag, size = 0x4, scoped, tag = 'scoped memory for tpu_custom_call.1']
    #allocation7 [shape = 'u8[98304]{0}', space=vmem, size = 0x18000, scoped, tag = 'input window, operand 2, single buffered']
    #allocation8 [shape = 'u8[2048]{0}', space=vmem, size = 0x800, scoped, tag = 'input window, operand 3, single buffered']
    #allocation9 [shape = 's32[1]{0}', space=sflag, size = 0x4, scoped, tag = 'scoped memory for tpu_custom_call.1']
    #allocation10 [shape = 'u8[2048]{0}', space=vmem, size = 0x800, scoped, tag = 'output window, operand 0, single buffered']
    %9 = vsyncpa [#allocation3], 0
    %10 = vsyncpa [#allocation6], 0
    %11 = vsyncpa [#allocation9], 0
    %12 = vsyncpa [#allocation4], 0
    // Predicated region
    $region2: #{tpu_custom_call.1} parent=1 // pred_check
      _
    $region3: #{tpu_custom_call.1} parent=1 // pred_check_branch
      %14 = sbr.rel (0) target = $region5
    $region4: #{tpu_custom_call.1} parent=1 // pred_region
      %16 = vsyncadd [#allocation3], 0
      %s18 = sshll.u32 %s0, 4
      %s19 = int_to_ptr.hbm [resolvable:$true] %s18
      %s20 = sshll.u32 [#allocation2], 4
      %s21 = int_to_ptr.vmem [resolvable:$true] %s20
      %23 = dma.hbm_to_vmem [thread:$0]  %s19, 128, %s21, [#allocation3]
    $region5: #{tpu_custom_call.1} parent=1 // pred_fallthru
      _
    // Predicated region
    $region6: #{tpu_custom_call.1} parent=1 // pred_check
      _
    $region7: #{tpu_custom_call.1} parent=1 // pred_check_branch
      %25 = sbr.rel (0) target = $region9
    $region8: #{tpu_custom_call.1} parent=1 // pred_region
      %27 = vsyncadd [#allocation6], 0
      %s28 = sshll.u32 %s1, 4
      %s29 = int_to_ptr.hbm [resolvable:$true] %s28
      %s30 = sshll.u32 [#allocation5], 4
      %s31 = int_to_ptr.vmem [resolvable:$true] %s30
      %36 = dma.hbm_to_vmem [thread:$0]  %s29, 256, %s31, [#allocation6], 64, 64, 4
    $region9: #{tpu_custom_call.1} parent=1 // pred_fallthru
      _
    // Predicated region
    $region10: #{tpu_custom_call.1} parent=1 // pred_check
      _
    $region11: #{tpu_custom_call.1} parent=1 // pred_check_branch
      %38 = sbr.rel (0) target = $region13
    $region12: #{tpu_custom_call.1} parent=1 // pred_region
      %40 = vsyncadd [#allocation6], 0
      %s41 = sshll.u32 %s2, 4
      %s42 = int_to_ptr.hbm [resolvable:$true] %s41
      %s43 = sshll.u32 [#allocation7], 4
      %s44 = int_to_ptr.vmem [resolvable:$true] %s43
      %49 = dma.hbm_to_vmem [thread:$0]  %s42, 3072, %s44, [#allocation6], 64, 64, 4
    $region13: #{tpu_custom_call.1} parent=1 // pred_fallthru
      _
    // Predicated region
    $region14: #{tpu_custom_call.1} parent=1 // pred_check
      _
    $region15: #{tpu_custom_call.1} parent=1 // pred_check_branch
      %51 = sbr.rel (0) target = $region17
    $region16: #{tpu_custom_call.1} parent=1 // pred_region
      %53 = vsyncadd [#allocation9], 0
      %s55 = sshll.u32 %s3, 4
      %s56 = int_to_ptr.hbm [resolvable:$true] %s55
      %s57 = sshll.u32 [#allocation8], 4
      %s58 = int_to_ptr.vmem [resolvable:$true] %s57
      %60 = dma.hbm_to_vmem [thread:$0]  %s56, 64, %s58, [#allocation9]
    $region17: #{tpu_custom_call.1} parent=1 // pred_fallthru
      _
    // Predicated region
    $region18: #{tpu_custom_call.1} parent=1 // pred_check
      _
    $region19: #{tpu_custom_call.1} parent=1 // pred_check_branch
      %62 = sbr.rel (0) target = $region21
    $region20: #{tpu_custom_call.1} parent=1 // pred_region
      %64 = dma.done [#allocation3], 128
    $region21: #{tpu_custom_call.1} parent=1 // pred_fallthru
      _
    // Predicated region
    $region22: #{tpu_custom_call.1} parent=1 // pred_check
      _
    $region23: #{tpu_custom_call.1} parent=1 // pred_check_branch
      %66 = sbr.rel (0) target = $region25
    $region24: #{tpu_custom_call.1} parent=1 // pred_region
      %68 = dma.done [#allocation6], 256
    $region25: #{tpu_custom_call.1} parent=1 // pred_fallthru
      _
    // Predicated region
    $region26: #{tpu_custom_call.1} parent=1 // pred_check
      _
    $region27: #{tpu_custom_call.1} parent=1 // pred_check_branch
      %70 = sbr.rel (0) target = $region29
    $region28: #{tpu_custom_call.1} parent=1 // pred_region
      %72 = dma.done [#allocation6], 3072
    $region29: #{tpu_custom_call.1} parent=1 // pred_fallthru
      _
    // Predicated region
    $region30: #{tpu_custom_call.1} parent=1 // pred_check
      _
    $region31: #{tpu_custom_call.1} parent=1 // pred_check_branch
      %74 = sbr.rel (0) target = $region33
    $region32: #{tpu_custom_call.1} parent=1 // pred_region
      %76 = dma.done [#allocation9], 64
    $region33: #{tpu_custom_call.1} parent=1 // pred_fallthru
      _
    %v78 = vld [vmem:[#allocation8] sm:$0xf]
    %v79 = vld [vmem:[#allocation2] sm:$0xff]
    %v80 = vpack.c.bf16 %v79, %v79
    %v81 = vld [vmem:[#allocation5] sm:$0xf]
    %v82 = vld [vmem:[#allocation5 + $0x4] sm:$0xf]
    %v83 = vld [vmem:[#allocation5 + $0x8] sm:$0xf]
    %v84 = vld [vmem:[#allocation5 + $0xc] sm:$0xf]
    %v85 = vperm.slane %v78, 0
    %v90 = vunpack.c.l.b16 %v81
    %v91 = vunpack.c.l.b16 %v82
    %v92 = vunpack.c.l.b16 %v83
    %v93 = vunpack.c.l.b16 %v84
    %v94 = vpack.c.b16 %v91, %v90
    %v95 = vpack.c.b16 %v93, %v92
    %vm98 = vcmask 261120
    %v100 = vsel %vm98, %v80, 0
    %102 = vmatpush.bf16.msra.mxu0 0
    %103 = vmatpush.bf16.msra.mxu0 0
    %104 = vmatpush.bf16.msra.mxu0 0
    %105 = vmatpush.bf16.msra.mxu0 0
    %106 = vmatpush.bf16.msra.mxu0 0
    %107 = vmatpush.bf16.msra.mxu0 0
    %108 = vmatpush.bf16.msra.mxu0 %v95
    %109 = vmatpush.bf16.msra.mxu0 %v94
    %110 = vmatmul.bf16.gmra.mxu0 %v100
    %v111 = vpop.f32.mrf.mxu0
    %v112 = vadd.f32 %v85, %v111
    %v113 = vpop.f32.mrf.mxu0
    %114 = vdwg.mxu0
    %v115 = vmax.f32 %v112, 0.0
    %v116 = vpack.c.bf16 %v115, %v115
    %v117 = vld [vmem:[#allocation7] sm:$0xf]
    %v118 = vld [vmem:[#allocation7 + $0x4] sm:$0xf]
    %v119 = vld [vmem:[#allocation7 + $0x8] sm:$0xf]
    %v120 = vld [vmem:[#allocation7 + $0xc] sm:$0xf]
    %v121 = vld [vmem:[#allocation7 + $0x10] sm:$0xf]
    %v122 = vld [vmem:[#allocation7 + $0x14] sm:$0xf]
    %v123 = vld [vmem:[#allocation7 + $0x18] sm:$0xf]
    %v124 = vld [vmem:[#allocation7 + $0x1c] sm:$0xf]
    %v125 = vld [vmem:[#allocation7 + $0x20] sm:$0xf]
    %v126 = vld [vmem:[#allocation7 + $0x24] sm:$0xf]
    %v127 = vld [vmem:[#allocation7 + $0x28] sm:$0xf]
    %v128 = vld [vmem:[#allocation7 + $0x2c] sm:$0xf]
    %v129 = vld [vmem:[#allocation7 + $0x30] sm:$0xf]
    %v130 = vld [vmem:[#allocation7 + $0x34] sm:$0xf]
    %v131 = vld [vmem:[#allocation7 + $0x38] sm:$0xf]
    %v132 = vld [vmem:[#allocation7 + $0x3c] sm:$0xf]
    %v133 = vperm.slane %v78, 1
    %v150 = vunpack.c.l.b16 %v117
    %v151 = vunpack.c.l.b16 %v118
    %v152 = vunpack.c.l.b16 %v119
    %v153 = vunpack.c.l.b16 %v120
    %v154 = vunpack.c.l.b16 %v121
    %v155 = vunpack.c.l.b16 %v122
    %v156 = vunpack.c.l.b16 %v123
    %v157 = vunpack.c.l.b16 %v124
    %v158 = vunpack.c.l.b16 %v125
    %v159 = vunpack.c.l.b16 %v126
    %v160 = vunpack.c.l.b16 %v127
    %v161 = vunpack.c.l.b16 %v128
    %v162 = vunpack.c.l.b16 %v129
    %v163 = vunpack.c.l.b16 %v130
    %v164 = vunpack.c.l.b16 %v131
    %v165 = vunpack.c.l.b16 %v132
    %v166 = vpack.c.b16 %v151, %v150
    %v167 = vpack.c.b16 %v153, %v152
    %v168 = vpack.c.b16 %v155, %v154
    %v169 = vpack.c.b16 %v157, %v156
    %v170 = vpack.c.b16 %v159, %v158
    %v171 = vpack.c.b16 %v161, %v160
    %v172 = vpack.c.b16 %v163, %v162
    %v173 = vpack.c.b16 %v165, %v164
    %182 = vmatpush.bf16.msra.mxu0 %v173
    %183 = vmatpush.bf16.msra.mxu0 %v172
    %184 = vmatpush.bf16.msra.mxu0 %v171
    %185 = vmatpush.bf16.msra.mxu0 %v170
    %186 = vmatpush.bf16.msra.mxu0 %v169
    %187 = vmatpush.bf16.msra.mxu0 %v168
    %188 = vmatpush.bf16.msra.mxu0 %v167
    %189 = vmatpush.bf16.msra.mxu0 %v166
    %190 = vmatmul.bf16.gmra.mxu0 %v116
    %v191 = vpop.f32.mrf.mxu0
    %v192 = vadd.f32 %v133, %v191
    %v193 = vpop.f32.mrf.mxu0
    %194 = vdwg.mxu0
    %v195 = vmax.f32 %v192, 0.0
    %v196 = vpack.c.bf16 %v195, %v195
    %s197 = scalar_lea.vmem [#allocation7], 64
    %v198 = vld [vmem:[%s197] sm:$0xf]
    %v199 = vld [vmem:[%s197 + $0x4] sm:$0xf]
    %v200 = vld [vmem:[%s197 + $0x8] sm:$0xf]
    %v201 = vld [vmem:[%s197 + $0xc] sm:$0xf]
    %v202 = vld [vmem:[%s197 + $0x10] sm:$0xf]
    %v203 = vld [vmem:[%s197 + $0x14] sm:$0xf]
    %v204 = vld [vmem:[%s197 + $0x18] sm:$0xf]
    %v205 = vld [vmem:[%s197 + $0x1c] sm:$0xf]
    %v206 = vld [vmem:[%s197 + $0x20] sm:$0xf]
    %v207 = vld [vmem:[%s197 + $0x24] sm:$0xf]
    %v208 = vld [vmem:[%s197 + $0x28] sm:$0xf]
    %v209 = vld [vmem:[%s197 + $0x2c] sm:$0xf]
    %v210 = vld [vmem:[%s197 + $0x30] sm:$0xf]
    %v211 = vld [vmem:[%s197 + $0x34] sm:$0xf]
    %v212 = vld [vmem:[%s197 + $0x38] sm:$0xf]
    %v213 = vld [vmem:[%s197 + $0x3c] sm:$0xf]
    %v214 = vperm.slane %v78, 2
    %v231 = vunpack.c.l.b16 %v198
    %v232 = vunpack.c.l.b16 %v199
    %v233 = vunpack.c.l.b16 %v200
    %v234 = vunpack.c.l.b16 %v201
    %v235 = vunpack.c.l.b16 %v202
    %v236 = vunpack.c.l.b16 %v203
    %v237 = vunpack.c.l.b16 %v204
    %v238 = vunpack.c.l.b16 %v205
    %v239 = vunpack.c.l.b16 %v206
    %v240 = vunpack.c.l.b16 %v207
    %v241 = vunpack.c.l.b16 %v208
    %v242 = vunpack.c.l.b16 %v209
    %v243 = vunpack.c.l.b16 %v210
    %v244 = vunpack.c.l.b16 %v211
    %v245 = vunpack.c.l.b16 %v212
    %v246 = vunpack.c.l.b16 %v213
    %v247 = vpack.c.b16 %v232, %v231
    %v248 = vpack.c.b16 %v234, %v233
    %v249 = vpack.c.b16 %v236, %v235
    %v250 = vpack.c.b16 %v238, %v237
    %v251 = vpack.c.b16 %v240, %v239
    %v252 = vpack.c.b16 %v242, %v241
    %v253 = vpack.c.b16 %v244, %v243
    %v254 = vpack.c.b16 %v246, %v245
    %263 = vmatpush.bf16.msra.mxu0 %v254
    %264 = vmatpush.bf16.msra.mxu0 %v253
    %265 = vmatpush.bf16.msra.mxu0 %v252
    %266 = vmatpush.bf16.msra.mxu0 %v251
    %267 = vmatpush.bf16.msra.mxu0 %v250
    %268 = vmatpush.bf16.msra.mxu0 %v249
    %269 = vmatpush.bf16.msra.mxu0 %v248
    %270 = vmatpush.bf16.msra.mxu0 %v247
    %271 = vmatmul.bf16.gmra.mxu0 %v196
    %v272 = vpop.f32.mrf.mxu0
    %v273 = vadd.f32 %v214, %v272
    %v274 = vpop.f32.mrf.mxu0
    %275 = vdwg.mxu0
    %v276 = vmax.f32 %v273, 0.0
    %v277 = vpack.c.bf16 %v276, %v276
    %s278 = scalar_lea.vmem [#allocation7], 128
    %v279 = vld [vmem:[%s278] sm:$0xf]
    %v280 = vld [vmem:[%s278 + $0x4] sm:$0xf]
    %v281 = vld [vmem:[%s278 + $0x8] sm:$0xf]
    %v282 = vld [vmem:[%s278 + $0xc] sm:$0xf]
    %v283 = vld [vmem:[%s278 + $0x10] sm:$0xf]
    %v284 = vld [vmem:[%s278 + $0x14] sm:$0xf]
    %v285 = vld [vmem:[%s278 + $0x18] sm:$0xf]
    %v286 = vld [vmem:[%s278 + $0x1c] sm:$0xf]
    %v287 = vld [vmem:[%s278 + $0x20] sm:$0xf]
    %v288 = vld [vmem:[%s278 + $0x24] sm:$0xf]
    %v289 = vld [vmem:[%s278 + $0x28] sm:$0xf]
    %v290 = vld [vmem:[%s278 + $0x2c] sm:$0xf]
    %v291 = vld [vmem:[%s278 + $0x30] sm:$0xf]
    %v292 = vld [vmem:[%s278 + $0x34] sm:$0xf]
    %v293 = vld [vmem:[%s278 + $0x38] sm:$0xf]
    %v294 = vld [vmem:[%s278 + $0x3c] sm:$0xf]
    %v295 = vperm.slane %v78, 3
    %v312 = vunpack.c.l.b16 %v279
    %v313 = vunpack.c.l.b16 %v280
    %v314 = vunpack.c.l.b16 %v281
    %v315 = vunpack.c.l.b16 %v282
    %v316 = vunpack.c.l.b16 %v283
    %v317 = vunpack.c.l.b16 %v284
    %v318 = vunpack.c.l.b16 %v285
    %v319 = vunpack.c.l.b16 %v286
    %v320 = vunpack.c.l.b16 %v287
    %v321 = vunpack.c.l.b16 %v288
    %v322 = vunpack.c.l.b16 %v289
    %v323 = vunpack.c.l.b16 %v290
    %v324 = vunpack.c.l.b16 %v291
    %v325 = vunpack.c.l.b16 %v292
    %v326 = vunpack.c.l.b16 %v293
    %v327 = vunpack.c.l.b16 %v294
    %v328 = vpack.c.b16 %v313, %v312
    %v329 = vpack.c.b16 %v315, %v314
    %v330 = vpack.c.b16 %v317, %v316
    %v331 = vpack.c.b16 %v319, %v318
    %v332 = vpack.c.b16 %v321, %v320
    %v333 = vpack.c.b16 %v323, %v322
    %v334 = vpack.c.b16 %v325, %v324
    %v335 = vpack.c.b16 %v327, %v326
    %344 = vmatpush.bf16.msra.mxu0 %v335
    %345 = vmatpush.bf16.msra.mxu0 %v334
    %346 = vmatpush.bf16.msra.mxu0 %v333
    %347 = vmatpush.bf16.msra.mxu0 %v332
    %348 = vmatpush.bf16.msra.mxu0 %v331
    %349 = vmatpush.bf16.msra.mxu0 %v330
    %350 = vmatpush.bf16.msra.mxu0 %v329
    %351 = vmatpush.bf16.msra.mxu0 %v328
    %352 = vmatmul.bf16.gmra.mxu0 %v277
    %v353 = vpop.f32.mrf.mxu0
    %v354 = vadd.f32 %v295, %v353
    %v355 = vpop.f32.mrf.mxu0
    %356 = vdwg.mxu0
    %v357 = vmax.f32 %v354, 0.0
    %v358 = vpack.c.bf16 %v357, %v357
    %359 = vst [vmem:[#allocation10] sm:$0xf] %v358
    // Predicated region
    $region34: #{tpu_custom_call.1} parent=1 // pred_check
      _
    $region35: #{tpu_custom_call.1} parent=1 // pred_check_branch
      %361 = sbr.rel (0) target = $region37
    $region36: #{tpu_custom_call.1} parent=1 // pred_region
      %363 = vsyncadd [#allocation4], 0
      %s365 = sshll.u32 [#allocation10], 4
      %s366 = int_to_ptr.vmem [resolvable:$true] %s365
      %s367 = sshll.u32 %s4, 4
      %s368 = int_to_ptr.hbm [resolvable:$true] %s367
      %370 = dma.vmem_to_hbm [thread:$0]  %s366, 64, %s368, [#allocation4]
    $region37: #{tpu_custom_call.1} parent=1 // pred_fallthru
      _
    // Predicated region
    $region38: #{tpu_custom_call.1} parent=1 // pred_check
      _
    $region39: #{tpu_custom_call.1} parent=1 // pred_check_branch
      %372 = sbr.rel (0) target = $region41
    $region40: #{tpu_custom_call.1} parent=1 // pred_region
      %374 = dma.done [#allocation4], 64
    $region41: #{tpu_custom_call.1} parent=1 // pred_fallthru
      _
    %375 = vsyncpa [#allocation3], 1
    %376 = vsyncpa [#allocation6], 1
    %377 = vsyncpa [#allocation9], 1
    %378 = vsyncpa [#allocation4], 1

</llo_original>
